<compile_context>
chip_gen: v7x
topology: tpu7x:2x2x1
jax: 0.10.0
libtpu: 0.0.40
codegen_flags: <defaults>
</compile_context>

<pallas_src>
import jax
import jax.numpy as jnp
import numpy as np
from jax.experimental import pallas as pl
from jax.experimental.pallas import tpu as pltpu

# ---- ConvModule configuration (mirrors nn.Conv2d/_BatchNorm shapes) ----
IN_CH, OUT_CH = 4, 8
KH = KW = 3
STRIDE = 1
PAD = 1
BN_EPS = 1e-5
N, H, W = 2, 16, 16


def conv_bn_relu_kernel(w_ref, xs_ref, b_ref, o_ref):
    """Fused (BN-folded) conv-as-GEMM + bias + ReLU, lane-dense output.

    w_ref : (Cout, KK*Cin)   folded weights
    xs_ref: (KK*Cin, M)      im2col'd input (transposed), M = N*Ho*Wo
    b_ref : (Cout, 1)        folded bias
    o_ref : (Cout, M)
    """
    acc = jnp.dot(w_ref[...], xs_ref[...],
                  preferred_element_type=jnp.float32)       # single MXU GEMM
    acc = acc + b_ref[...]                                   # lane-broadcast bias
    o_ref[...] = jnp.maximum(acc, 0.0).astype(o_ref.dtype)   # ReLU


def conv_module_forward(x_nchw, weight, bias, bn_gamma, bn_beta, bn_mean, bn_var):
    """ConvModule.forward in eval mode, order=('conv','norm','act')."""
    n, cin, h, w = x_nchw.shape
    cout = weight.shape[0]
    kk = KH * KW

    # --- BN folding (efficient_conv_bn_eval_forward semantics), JAX glue ---
    coeff = bn_gamma * jax.lax.rsqrt(bn_var + BN_EPS)            # (Cout,)
    w_fold = weight * coeff[:, None, None, None]                 # (Cout,Cin,KH,KW)
    b_fold = bn_beta + coeff * (bias - bn_mean)                  # (Cout,)

    # --- layout plumbing: pad NCHW, channels-first view, transposed im2col ---
    ho = (h + 2 * PAD - KH) // STRIDE + 1
    wo = (w + 2 * PAD - KW) // STRIDE + 1
    m = n * ho * wo

    x_pad = jnp.pad(x_nchw, ((0, 0), (0, 0), (PAD, PAD), (PAD, PAD)))
    x_cnhw = jnp.transpose(x_pad, (1, 0, 2, 3))                  # (Cin, N, Hp, Wp)

    taps = []
    for kh in range(KH):
        for kw in range(KW):
            patch = x_cnhw[:, :, kh:kh + (ho - 1) * STRIDE + 1:STRIDE,
                           kw:kw + (wo - 1) * STRIDE + 1:STRIDE]  # (Cin,N,Ho,Wo)
            taps.append(patch.reshape(cin, m))
    xs_t = jnp.concatenate(taps, axis=0)                         # (KK*Cin, M)

    # weights: (Cout,Cin,KH,KW) -> (Cout,KH,KW,Cin) -> (Cout, KK*Cin)
    # column ordering (kh, kw, cin) matches the row ordering of xs_t.
    w2 = jnp.transpose(w_fold, (0, 2, 3, 1)).reshape(cout, kk * cin)
    b2 = b_fold.reshape(cout, 1)

    # bf16 operands, f32 accumulation (fast MXU path on v6e/v7x).
    xs_t = xs_t.astype(jnp.bfloat16)
    w2 = w2.astype(jnp.bfloat16)

    out_t = pl.pallas_call(
        conv_bn_relu_kernel,
        out_shape=jax.ShapeDtypeStruct((cout, m), jnp.float32),
        grid=(1,),
        in_specs=[
            pl.BlockSpec((cout, kk * cin), lambda i: (0, 0)),
            pl.BlockSpec((kk * cin, m), lambda i: (0, 0)),
            pl.BlockSpec((cout, 1), lambda i: (0, 0)),
        ],
        out_specs=pl.BlockSpec((cout, m), lambda i: (0, 0)),
        compiler_params=pltpu.CompilerParams(
            dimension_semantics=("arbitrary",)),
    )(w2, xs_t, b2)

    # (Cout, M) -> (Cout, N, Ho, Wo) -> (N, Cout, Ho, Wo)
    return jnp.transpose(out_t.reshape(cout, n, ho, wo), (1, 0, 2, 3))


def reference(x, weight, bias, gamma, beta, mean, var):
    """Pure-JAX reference: conv2d -> BN(eval) -> ReLU, NCHW, f32."""
    out = jax.lax.conv_general_dilated(
        x, weight, window_strides=(STRIDE, STRIDE),
        padding=((PAD, PAD), (PAD, PAD)),
        dimension_numbers=('NCHW', 'OIHW', 'NCHW'))
    out = out + bias[None, :, None, None]
    out = (out - mean[None, :, None, None]) * jax.lax.rsqrt(var + BN_EPS)[None, :, None, None]
    out = out * gamma[None, :, None, None] + beta[None, :, None, None]
    return jnp.maximum(out, 0.0)


if __name__ == "__main__":
    key = jax.random.PRNGKey(0)
    kx, kw_, kmean, kvar = jax.random.split(key, 4)

    x = jax.random.normal(kx, (N, IN_CH, H, W), jnp.float32)    # NCHW like PyTorch

    # kaiming_init(conv, a=0, nonlinearity='relu'): normal(0, sqrt(2/fan_in))
    fan_in = IN_CH * KH * KW
    std = float(np.sqrt(2.0 / fan_in))
    weight = std * jax.random.normal(kw_, (OUT_CH, IN_CH, KH, KW), jnp.float32)
    bias = jnp.zeros((OUT_CH,), jnp.float32)   # conv bias off (bias='auto' + norm)

    bn_gamma = jnp.ones((OUT_CH,), jnp.float32)   # constant_init(norm, 1, bias=0)
    bn_beta = jnp.zeros((OUT_CH,), jnp.float32)
    # deterministic "trained" running stats so BN folding is non-trivial
    bn_mean = 0.1 * jax.random.normal(kmean, (OUT_CH,), jnp.float32)
    bn_var = jnp.abs(jax.random.normal(kvar, (OUT_CH,), jnp.float32)) + 0.5

    out = conv_module_forward(x, weight, bias, bn_gamma, bn_beta, bn_mean, bn_var)
    out = jax.block_until_ready(out)

    ref = reference(x, weight, bias, bn_gamma, bn_beta, bn_mean, bn_var)
    assert out.shape == (N, OUT_CH, H, W), out.shape
    # tolerance accounts for bf16 operands (f32 accumulation) in the kernel
    np.testing.assert_allclose(np.asarray(out), np.asarray(ref), rtol=5e-2, atol=5e-2)
    print("KERNEL_OK")
</pallas_src>

<mosaic_0001>
module attributes {stable_mosaic.version = 11 : i64} {
  func.func @conv_bn_relu_kernel(%arg0: i32, %arg1: memref<8x36xbf16, #tpu.memory_space<vmem>>, %arg2: memref<36x512xbf16, #tpu.memory_space<vmem>>, %arg3: memref<8x1xf32, #tpu.memory_space<vmem>>, %arg4: memref<8x512xf32, #tpu.memory_space<vmem>>) attributes {dimension_semantics = [#tpu.dimension_semantics<arbitrary>], iteration_bounds = array<i64: 1>, scalar_prefetch = 0 : i64, scratch_operands = 0 : i64, tpu.core_type = #tpu.core_type<tc>, window_params = [{pipeline_mode = #tpu.pipeline_mode<synchronous>, transform_indices = @transform_0, window_bounds = array<i64: 8, 36>}, {pipeline_mode = #tpu.pipeline_mode<synchronous>, transform_indices = @transform_1, window_bounds = array<i64: 36, 512>}, {pipeline_mode = #tpu.pipeline_mode<synchronous>, transform_indices = @transform_2, window_bounds = array<i64: 8, 1>}, {pipeline_mode = #tpu.pipeline_mode<synchronous>, transform_indices = @transform_3, window_bounds = array<i64: 8, 512>}]} {
    %c0 = arith.constant 0 : index
    %c0_0 = arith.constant 0 : index
    %0 = vector.load %arg1[%c0, %c0_0] : memref<8x36xbf16, #tpu.memory_space<vmem>>, vector<8x36xbf16>
    %c0_1 = arith.constant 0 : index
    %c0_2 = arith.constant 0 : index
    %1 = vector.load %arg2[%c0_1, %c0_2] : memref<36x512xbf16, #tpu.memory_space<vmem>>, vector<36x512xbf16>
    %cst = arith.constant dense<0.000000e+00> : vector<8x512xf32>
    %2 = tpu.matmul %0, %1, %cst {dimension_numbers = #tpu.dot_dimension_numbers<[1], [0], [0], [1], [0, 0, 1, 1], [], []>} : vector<8x36xbf16>, vector<36x512xbf16>, vector<8x512xf32> -> vector<8x512xf32>
    %c0_3 = arith.constant 0 : index
    %c0_4 = arith.constant 0 : index
    %3 = vector.load %arg3[%c0_3, %c0_4] : memref<8x1xf32, #tpu.memory_space<vmem>>, vector<8x1xf32>
    %4 = vector.broadcast %3 : vector<8x1xf32> to vector<8x512xf32>
    %5 = arith.addf %2, %4 : vector<8x512xf32>
    %cst_5 = arith.constant 0.000000e+00 : f32
    %6 = vector.broadcast %cst_5 : f32 to vector<8x512xf32>
    %7 = arith.maximumf %5, %6 : vector<8x512xf32>
    %c0_6 = arith.constant 0 : index
    %c0_7 = arith.constant 0 : index
    %8 = vector.load %arg4[%c0_6, %c0_7] : memref<8x512xf32, #tpu.memory_space<vmem>>, vector<8x512xf32>
    tpu.vector_store %arg4[%c0_6, %c0_7], %7 {strides = array<i32>} : memref<8x512xf32, #tpu.memory_space<vmem>>, vector<8x512xf32>,
    return
  }
  func.func @transform_0(%arg0: i32) -> (i32, i32) {
    %c0_i32 = arith.constant 0 : i32
    %c0_i32_0 = arith.constant 0 : i32
    %c0_i32_1 = arith.constant 0 : i32
    return %c0_i32, %c0_i32_0 : i32, i32
  }
  func.func @transform_1(%arg0: i32) -> (i32, i32) {
    %c0_i32 = arith.constant 0 : i32
    %c0_i32_0 = arith.constant 0 : i32
    %c0_i32_1 = arith.constant 0 : i32
    return %c0_i32, %c0_i32_0 : i32, i32
  }
  func.func @transform_2(%arg0: i32) -> (i32, i32) {
    %c0_i32 = arith.constant 0 : i32
    %c0_i32_0 = arith.constant 0 : i32
    %c0_i32_1 = arith.constant 0 : i32
    return %c0_i32, %c0_i32_0 : i32, i32
  }
  func.func @transform_3(%arg0: i32) -> (i32, i32) {
    %c0_i32 = arith.constant 0 : i32
    %c0_i32_0 = arith.constant 0 : i32
    %c0_i32_1 = arith.constant 0 : i32
    return %c0_i32, %c0_i32_0 : i32, i32
  }
}

</mosaic_0001>

<llo_original>
// kernel: tpu_custom_call.1
$region0: #{tpu_custom_call.1}
  #allocation0 [shape = 'u32[]', space=smem, size = 0x4, offset = 0x4, fixed_abs, tag = 'smem constant byte address 0x4 - core index']
  #allocation1 [shape = 'u32[144,128]{1,0:T(1,128)}', space=vmem, size = 0x12000, scoped, tag = 'internal scratch']
  %s0 = inlined_call_operand.vmem [shape: bf16[8,36], index: 0, kind: input, shape index: {}]
  %s1 = inlined_call_operand.hbm [shape: bf16[36,512], index: 1, kind: input, shape index: {}]
  %s2 = inlined_call_operand.vmem [shape: f32[8,1], index: 2, kind: input, shape index: {}]
  %s3 = inlined_call_operand.hbm [shape: f32[8,512], index: 3, kind: output, shape index: {}]
  %s4 = sld [smem:[#allocation0]]
  $region26: #{tpu_custom_call.1} parent=0
    _
  %s6 = ssub.s32 1, %s4
  %s7 = scalar_select 0, %s6, %s4
  $region1: #{tpu_custom_call.1} parent=0
    #allocation2 [shape = 'u8[40960]{0}', space=vmem, size = 0xa000, scoped, tag = 'input window, operand 1, single buffered']
    #allocation3 [shape = 's32[1]{0}', space=sflag, size = 0x4, scoped, tag = 'scoped memory for tpu_custom_call.1']
    #allocation4 [shape = 's32[1]{0}', space=sflag, size = 0x4, scoped, tag = 'scoped memory for tpu_custom_call.1']
    #allocation5 [shape = 'u8[16384]{0}', space=vmem, size = 0x4000, scoped, tag = 'output window, operand 0, single buffered']
    %8 = vsyncpa [#allocation3], 0
    %9 = vsyncpa [#allocation4], 0
    // Predicated region
    $region2: #{tpu_custom_call.1} parent=1 // pred_check
      _
    $region3: #{tpu_custom_call.1} parent=1 // pred_check_branch
      %11 = sbr.rel (0) target = $region5
    $region4: #{tpu_custom_call.1} parent=1 // pred_region
      _
    $region5: #{tpu_custom_call.1} parent=1 // pred_fallthru
      _
    // Predicated region
    $region6: #{tpu_custom_call.1} parent=1 // pred_check
      _
    $region7: #{tpu_custom_call.1} parent=1 // pred_check_branch
      %13 = sbr.rel (0) target = $region9
    $region8: #{tpu_custom_call.1} parent=1 // pred_region
      %s15 = ssub.s32 1280, 1280
      %16 = vsyncadd [#allocation3], %s15
      %s17 = sshll.u32 [#allocation2], 4
      %s18 = int_to_ptr.vmem [resolvable:$true] %s17
      %23 = dma.hbm_to_vmem [thread:$0]  %s1, 1280, %s18, [#allocation3], 256, 256, 16
    $region9: #{tpu_custom_call.1} parent=1 // pred_fallthru
      _
    // Predicated region
    $region10: #{tpu_custom_call.1} parent=1 // pred_check
      _
    $region11: #{tpu_custom_call.1} parent=1 // pred_check_branch
      %25 = sbr.rel (0) target = $region13
    $region12: #{tpu_custom_call.1} parent=1 // pred_region
      _
    $region13: #{tpu_custom_call.1} parent=1 // pred_fallthru
      _
    // Predicated region
    $region14: #{tpu_custom_call.1} parent=1 // pred_check
      _
    $region15: #{tpu_custom_call.1} parent=1 // pred_check_branch
      %27 = sbr.rel (0) target = $region17
    $region16: #{tpu_custom_call.1} parent=1 // pred_region
      %28 = dma.done [#allocation3], 1280
    $region17: #{tpu_custom_call.1} parent=1 // pred_fallthru
      _
    %v30 = vld [vmem:[%s0] sm:$0xf]
    %v31 = vld [vmem:[#allocation2] sm:$0xff]
    %v32 = vld [vmem:[#allocation2 + $0x8] sm:$0xff]
    %v33 = vld [vmem:[#allocation2 + $0x10] sm:$0xff]
    %v34 = vld [vmem:[#allocation2 + $0x18] sm:$0xff]
    %v35 = vld [vmem:[#allocation2 + $0x20] sm:$0xff]
    %v36 = vld [vmem:[#allocation2 + $0x28] sm:$0xff]
    %v37 = vld [vmem:[#allocation2 + $0x30] sm:$0xff]
    %v38 = vld [vmem:[#allocation2 + $0x38] sm:$0xff]
    %v39 = vld [vmem:[#allocation2 + $0x40] sm:$0x33]
    %v40 = vld [vmem:[#allocation2 + $0x48] sm:$0x33]
    %v41 = vld [vmem:[%s2] sm:$0xff]
    %43 = vset.pattern.permute.xlu0 0
    %44 = vperm.xlu0 %43, %v41
    %v45 = vpop.permute.xlu0 %44
    %v57 = vunpack.c.l.b16 %v31
    %v58 = vunpack.c.h.b16 %v31
    %v59 = vunpack.c.l.b16 %v32
    %v60 = vunpack.c.h.b16 %v32
    %v61 = vunpack.c.l.b16 %v33
    %v62 = vunpack.c.h.b16 %v33
    %v63 = vunpack.c.l.b16 %v34
    %v64 = vunpack.c.h.b16 %v34
    %v65 = vunpack.c.l.b16 %v35
    %v66 = vunpack.c.h.b16 %v35
    %v67 = vunpack.c.l.b16 %v36
    %v68 = vunpack.c.h.b16 %v36
    %v69 = vunpack.c.l.b16 %v37
    %v70 = vunpack.c.h.b16 %v37
    %v71 = vunpack.c.l.b16 %v38
    %v72 = vunpack.c.h.b16 %v38
    %v73 = vunpack.c.l.b16 %v39
    %v74 = vunpack.c.h.b16 %v39
    %v75 = vunpack.c.l.b16 %v40
    %v76 = vunpack.c.h.b16 %v40
    %v77 = vpack.c.b16 %v61, %v57
    %v78 = vpack.c.b16 %v62, %v58
    %v79 = vpack.c.b16 %v63, %v59
    %v80 = vpack.c.b16 %v64, %v60
    %v81 = vpack.c.b16 %v69, %v65
    %v82 = vpack.c.b16 %v70, %v66
    %v83 = vpack.c.b16 %v71, %v67
    %v84 = vpack.c.b16 %v72, %v68
    %v85 = vpack.c.b16 %v73, %v73
    %v86 = vpack.c.b16 %v74, %v74
    %v87 = vpack.c.b16 %v75, %v75
    %v88 = vpack.c.b16 %v76, %v76
    %vm97 = vcmask 293888
    %v99 = vsel %vm97, %v30, 0
    %vm101 = vcmask 1041408
    %v103 = vsel %vm101, %v85, 0
    %v106 = vsel %vm101, %v86, 0
    %v109 = vsel %vm101, %v87, 0
    %v112 = vsel %vm101, %v88, 0
    %114 = vmatprep.subr.bf16.mxu0 %v78
    %115 = vmatpush1.bf16.msra.mxu0 %v77
    %116 = vmatprep.subr.bf16.mxu0 %v82
    %117 = vmatpush1.bf16.msra.mxu0 %v81
    %118 = vmatprep.subr.bf16.mxu0 %v106
    %119 = vmatpush1.bf16.msra.mxu0 %v103
    %120 = vmatprep.subr.bf16.mxu0 0
    %121 = vmatpush1.bf16.msra.mxu0 0
    %122 = vmatprep.subr.bf16.mxu0 0
    %123 = vmatpush1.bf16.msra.mxu0 0
    %124 = vmatprep.subr.bf16.mxu0 0
    %125 = vmatpush1.bf16.msra.mxu0 0
    %126 = vmatprep.subr.bf16.mxu0 0
    %127 = vmatpush1.bf16.msra.mxu0 0
    %128 = vmatprep.subr.bf16.mxu0 0
    %129 = vmatpush1.bf16.msra.mxu0 0
    %130 = vmatprep.subr.bf16.mxu0 0
    %131 = vmatpush1.bf16.msra.mxu0 0
    %132 = vmatprep.subr.bf16.mxu0 0
    %133 = vmatpush1.bf16.msra.mxu0 0
    %134 = vmatprep.subr.bf16.mxu0 0
    %135 = vmatpush1.bf16.msra.mxu0 0
    %136 = vmatprep.subr.bf16.mxu0 0
    %137 = vmatpush1.bf16.msra.mxu0 0
    %138 = vmatprep.subr.bf16.mxu0 0
    %139 = vmatpush1.bf16.msra.mxu0 0
    %140 = vmatprep.subr.bf16.mxu0 0
    %141 = vmatpush1.bf16.msra.mxu0 0
    %142 = vmatprep.subr.bf16.mxu0 0
    %143 = vmatpush1.bf16.msra.mxu0 0
    %144 = vmatprep.subr.bf16.mxu0 0
    %145 = vmatpush1.bf16.msra.mxu0 0
    %146 = vmatprep.mubr.bf16.mxu0 0
    %147 = vmatmul.mubr.bf16.gmra.mrb[0].mxu0 %v99
    %v148 = vpop.f32.mrb[0].mxu0
    %v149 = vadd.f32 %v45, %v148
    %v150 = vpop.f32.mrb[0].mxu0
    %v151 = vadd.f32 %v45, %v150
    %v152 = vpop.f32.mrb[0].mxu0
    %v153 = vpop.f32.mrb[0].mxu0
    %154 = vdwg.mxu0
    %155 = vmatprep.subr.bf16.mxu0 %v80
    %156 = vmatpush1.bf16.msra.mxu0 %v79
    %157 = vmatprep.subr.bf16.mxu0 %v84
    %158 = vmatpush1.bf16.msra.mxu0 %v83
    %159 = vmatprep.subr.bf16.mxu0 %v112
    %160 = vmatpush1.bf16.msra.mxu0 %v109
    %161 = vmatprep.subr.bf16.mxu0 0
    %162 = vmatpush1.bf16.msra.mxu0 0
    %163 = vmatprep.subr.bf16.mxu0 0
    %164 = vmatpush1.bf16.msra.mxu0 0
    %165 = vmatprep.subr.bf16.mxu0 0
    %166 = vmatpush1.bf16.msra.mxu0 0
    %167 = vmatprep.subr.bf16.mxu0 0
    %168 = vmatpush1.bf16.msra.mxu0 0
    %169 = vmatprep.subr.bf16.mxu0 0
    %170 = vmatpush1.bf16.msra.mxu0 0
    %171 = vmatprep.subr.bf16.mxu0 0
    %172 = vmatpush1.bf16.msra.mxu0 0
    %173 = vmatprep.subr.bf16.mxu0 0
    %174 = vmatpush1.bf16.msra.mxu0 0
    %175 = vmatprep.subr.bf16.mxu0 0
    %176 = vmatpush1.bf16.msra.mxu0 0
    %177 = vmatprep.subr.bf16.mxu0 0
    %178 = vmatpush1.bf16.msra.mxu0 0
    %179 = vmatprep.subr.bf16.mxu0 0
    %180 = vmatpush1.bf16.msra.mxu0 0
    %181 = vmatprep.subr.bf16.mxu0 0
    %182 = vmatpush1.bf16.msra.mxu0 0
    %183 = vmatprep.subr.bf16.mxu0 0
    %184 = vmatpush1.bf16.msra.mxu0 0
    %185 = vmatprep.subr.bf16.mxu0 0
    %186 = vmatpush1.bf16.msra.mxu0 0
    %187 = vmatprep.mubr.bf16.mxu0 0
    %188 = vmatmul.mubr.bf16.gmra.mrb[0].mxu0 %v99
    %v189 = vpop.f32.mrb[0].mxu0
    %v190 = vadd.f32 %v45, %v189
    %v191 = vpop.f32.mrb[0].mxu0
    %v192 = vadd.f32 %v45, %v191
    %v193 = vpop.f32.mrb[0].mxu0
    %v194 = vpop.f32.mrb[0].mxu0
    %195 = vdwg.mxu0
    %v196 = vmax.f32 %v149, 0.0
    %v197 = vmax.f32 %v151, 0.0
    %v198 = vmax.f32 %v190, 0.0
    %v199 = vmax.f32 %v192, 0.0
    %200 = vst [vmem:[#allocation5] sm:$0xff] %v196
    %201 = vst [vmem:[#allocation5 + $0x8] sm:$0xff] %v197
    %202 = vst [vmem:[#allocation5 + $0x10] sm:$0xff] %v198
    %203 = vst [vmem:[#allocation5 + $0x18] sm:$0xff] %v199
    // Predicated region
    $region18: #{tpu_custom_call.1} parent=1 // pred_check
      _
    $region19: #{tpu_custom_call.1} parent=1 // pred_check_branch
      %205 = sbr.rel (0) target = $region21
    $region20: #{tpu_custom_call.1} parent=1 // pred_region
      %s207 = ssub.s32 512, 512
      %208 = vsyncadd [#allocation4], %s207
      %s210 = sshll.u32 [#allocation5], 4
      %s211 = int_to_ptr.vmem [resolvable:$true] %s210
      %213 = dma.vmem_to_hbm [thread:$0]  %s211, 512, %s3, [#allocation4]
    $region21: #{tpu_custom_call.1} parent=1 // pred_fallthru
      _
    // Predicated region
    $region22: #{tpu_custom_call.1} parent=1 // pred_check
      _
    $region23: #{tpu_custom_call.1} parent=1 // pred_check_branch
      %215 = sbr.rel (0) target = $region25
    $region24: #{tpu_custom_call.1} parent=1 // pred_region
      %216 = dma.done [#allocation4], 512
    $region25: #{tpu_custom_call.1} parent=1 // pred_fallthru
      _
    %217 = vsyncpa [#allocation3], 1
    %218 = vsyncpa [#allocation4], 1

</llo_original>
